<compile_context>
chip_gen: v6e
topology: v6e:2x2x1
jax: 0.10.0
libtpu: 0.0.40
codegen_flags: <defaults>
</compile_context>

<pallas_src>
import functools

import jax
import jax.numpy as jnp
from jax.experimental import pallas as pl
from jax.experimental.pallas import tpu as pltpu


def _mlp_kernel(num_hidden_layers, compute_dtype, *refs):
    # refs = (x_ref, w0, b0, w1, b1, ..., w_out, b_out, o_ref)
    x_ref = refs[0]
    o_ref = refs[-1]
    param_refs = refs[1:-1]

    h = x_ref[...]                                        # [bt, d_in]
    # Hidden LinearBlocks: relu(h @ W + b)
    for layer in range(num_hidden_layers):
        w = param_refs[2 * layer][...]                    # [in, out] (compute dtype)
        b = param_refs[2 * layer + 1][...]                # [1, out]  (f32)
        pre = jnp.dot(h.astype(compute_dtype), w,
                      preferred_element_type=jnp.float32) + b
        h = jnp.maximum(pre, 0.0)                         # f32 elementwise (v5e-safe)
    # Output Linear (no activation)
    w = param_refs[-2][...]
    b = param_refs[-1][...]
    out = jnp.dot(h.astype(compute_dtype), w,
                  preferred_element_type=jnp.float32) + b
    o_ref[...] = out.astype(o_ref.dtype)


def _choose_batch_tile(batch):
    """Batch tile: multiple of 128 sublanes. Single grid step for small
    batches (minimal per-step overhead); 4096-row tiles for large batches
    (pipelined + shardable, ~2 MiB double-buffered << 64 MiB v7x VMEM)."""
    b128 = pl.cdiv(batch, 128) * 128
    return b128 if b128 <= 4096 else 4096


@functools.partial(jax.jit, static_argnames=("batch_tile", "use_bf16"))
def mlp_forward(x, params, *, batch_tile=None, use_bf16=True):
    """x: [B, d_in]; params: list of (W[in, out], b[out]) pairs — hidden
    LinearBlocks first, output Linear last."""
    B, d_in = x.shape
    d_out = params[-1][0].shape[1]
    num_hidden_layers = len(params) - 1
    compute_dtype = jnp.bfloat16 if use_bf16 else jnp.float32

    if batch_tile is None:
        batch_tile = _choose_batch_tile(B)
    assert batch_tile % 128 == 0, "batch_tile must be a multiple of 128"

    n_tiles = pl.cdiv(B, batch_tile)
    B_pad = n_tiles * batch_tile
    x_p = x if B_pad == B else jnp.pad(x, ((0, B_pad - B), (0, 0)))

    flat_params = []
    in_specs = [pl.BlockSpec((batch_tile, d_in), lambda i: (i, 0))]
    for (w, b) in params:
        wi, wo = w.shape
        flat_params.append(w.astype(compute_dtype))               # [in, out]
        in_specs.append(pl.BlockSpec((wi, wo), lambda i: (0, 0)))
        flat_params.append(b.reshape(1, wo).astype(jnp.float32))  # [1, out]
        in_specs.append(pl.BlockSpec((1, wo), lambda i: (0, 0)))

    kernel = functools.partial(_mlp_kernel, num_hidden_layers, compute_dtype)

    out = pl.pallas_call(
        kernel,
        out_shape=jax.ShapeDtypeStruct((B_pad, d_out), x.dtype),
        grid_spec=pltpu.PrefetchScalarGridSpec(
            num_scalar_prefetch=0,
            grid=(n_tiles,),
            in_specs=in_specs,
            out_specs=pl.BlockSpec((batch_tile, d_out), lambda i: (i, 0)),
        ),
        compiler_params=pltpu.CompilerParams(
            dimension_semantics=("parallel",),
        ),
    )(x_p, *flat_params)

    return out if B_pad == B else out[:B]


def init_mlp_params(key, d_in, d_out, ch=32, num_layers=3):
    """Deterministic init mirroring MLP.reset_parameters(init_mode='fan_in'):
    kaiming_uniform (gain=sqrt(2) for ReLU LinearBlocks, gain=1 for the output
    linear); biases use nn.Linear's default uniform(-1/sqrt(fan_in), ...)."""
    params = []
    dims = [d_in] + [ch] * (num_layers + 1)
    # hidden LinearBlocks with ReLU
    for li in range(num_layers + 1):
        fin, fout = dims[li], dims[li + 1]
        key, kw, kb = jax.random.split(key, 3)
        gain = jnp.sqrt(2.0)  # kaiming for relu
        bound_w = gain * jnp.sqrt(3.0 / fin)
        w = jax.random.uniform(kw, (fin, fout), jnp.float32, -bound_w, bound_w)
        bound_b = 1.0 / jnp.sqrt(fin)
        b = jax.random.uniform(kb, (fout,), jnp.float32, -bound_b, bound_b)
        params.append((w, b))
    # output linear (nonlinearity='linear' -> gain=1)
    key, kw, kb = jax.random.split(key, 3)
    fin = ch
    bound_w = 1.0 * jnp.sqrt(3.0 / fin)
    w = jax.random.uniform(kw, (fin, d_out), jnp.float32, -bound_w, bound_w)
    bound_b = 1.0 / jnp.sqrt(fin)
    b = jax.random.uniform(kb, (d_out,), jnp.float32, -bound_b, bound_b)
    params.append((w, b))
    return params


def mlp_reference(x, params):
    h = x
    for (w, b) in params[:-1]:
        h = jnp.maximum(h @ w + b, 0.0)
    w, b = params[-1]
    return h @ w + b


# TODO(synk): LinearBlock._preact stashing and logging are introspection-only
# (no effect on the forward output) and are not reproduced.

if __name__ == "__main__":
    key = jax.random.PRNGKey(0)
    d_in, d_out, ch, num_layers = 16, 8, 32, 3

    kx, kp = jax.random.split(key)
    params = init_mlp_params(kp, d_in, d_out, ch=ch, num_layers=num_layers)

    # Main check: aligned batch (no pad / no slice path), bf16 MXU operands,
    # f32 accumulation.
    B = 256
    x = jax.random.normal(kx, (B, d_in), jnp.float32)
    out = jax.block_until_ready(mlp_forward(x, params, use_bf16=True))
    ref = mlp_reference(x, params)
    assert out.shape == (B, d_out), out.shape
    assert jnp.allclose(out, ref, atol=5e-2, rtol=5e-2), \
        "bf16 kernel mismatch vs f32 reference"

    # Ragged-batch + full-f32 check (exercises zero-pad path, tight tolerance).
    B2 = 40
    x2 = jax.random.normal(kx, (B2, d_in), jnp.float32)
    out2 = jax.block_until_ready(mlp_forward(x2, params, use_bf16=False))
    ref2 = mlp_reference(x2, params)
    assert out2.shape == (B2, d_out), out2.shape
    assert jnp.allclose(out2, ref2, atol=1e-4, rtol=1e-4), \
        "f32 kernel mismatch vs reference"

    print("KERNEL_OK")
</pallas_src>

<mosaic_0001>
module attributes {stable_mosaic.version = 11 : i64} {
  func.func @_mlp_kernel(%arg0: i32, %arg1: memref<256x16xf32, #tpu.memory_space<vmem>>, %arg2: memref<16x32xbf16, #tpu.memory_space<vmem>>, %arg3: memref<1x32xf32, #tpu.memory_space<vmem>>, %arg4: memref<32x32xbf16, #tpu.memory_space<vmem>>, %arg5: memref<1x32xf32, #tpu.memory_space<vmem>>, %arg6: memref<32x32xbf16, #tpu.memory_space<vmem>>, %arg7: memref<1x32xf32, #tpu.memory_space<vmem>>, %arg8: memref<32x32xbf16, #tpu.memory_space<vmem>>, %arg9: memref<1x32xf32, #tpu.memory_space<vmem>>, %arg10: memref<32x8xbf16, #tpu.memory_space<vmem>>, %arg11: memref<1x8xf32, #tpu.memory_space<vmem>>, %arg12: memref<256x8xf32, #tpu.memory_space<vmem>>) attributes {dimension_semantics = [#tpu.dimension_semantics<parallel>], iteration_bounds = array<i64: 1>, scalar_prefetch = 0 : i64, scratch_operands = 0 : i64, tpu.core_type = #tpu.core_type<tc>, window_params = [{transform_indices = @transform_0, window_bounds = array<i64: 256, 16>}, {pipeline_mode = #tpu.pipeline_mode<synchronous>, transform_indices = @transform_1, window_bounds = array<i64: 16, 32>}, {pipeline_mode = #tpu.pipeline_mode<synchronous>, transform_indices = @transform_2, window_bounds = array<i64: 1, 32>}, {pipeline_mode = #tpu.pipeline_mode<synchronous>, transform_indices = @transform_3, window_bounds = array<i64: 32, 32>}, {pipeline_mode = #tpu.pipeline_mode<synchronous>, transform_indices = @transform_4, window_bounds = array<i64: 1, 32>}, {pipeline_mode = #tpu.pipeline_mode<synchronous>, transform_indices = @transform_5, window_bounds = array<i64: 32, 32>}, {pipeline_mode = #tpu.pipeline_mode<synchronous>, transform_indices = @transform_6, window_bounds = array<i64: 1, 32>}, {pipeline_mode = #tpu.pipeline_mode<synchronous>, transform_indices = @transform_7, window_bounds = array<i64: 32, 32>}, {pipeline_mode = #tpu.pipeline_mode<synchronous>, transform_indices = @transform_8, window_bounds = array<i64: 1, 32>}, {pipeline_mode = #tpu.pipeline_mode<synchronous>, transform_indices = @transform_9, window_bounds = array<i64: 32, 8>}, {pipeline_mode = #tpu.pipeline_mode<synchronous>, transform_indices = @transform_10, window_bounds = array<i64: 1, 8>}, {transform_indices = @transform_11, window_bounds = array<i64: 256, 8>}]} {
    %c0 = arith.constant 0 : index
    %c0_0 = arith.constant 0 : index
    %0 = vector.load %arg1[%c0, %c0_0] : memref<256x16xf32, #tpu.memory_space<vmem>>, vector<256x16xf32>
    %c0_1 = arith.constant 0 : index
    %c0_2 = arith.constant 0 : index
    %1 = vector.load %arg2[%c0_1, %c0_2] : memref<16x32xbf16, #tpu.memory_space<vmem>>, vector<16x32xbf16>
    %c0_3 = arith.constant 0 : index
    %c0_4 = arith.constant 0 : index
    %2 = vector.load %arg3[%c0_3, %c0_4] : memref<1x32xf32, #tpu.memory_space<vmem>>, vector<1x32xf32>
    %3 = arith.truncf %0 : vector<256x16xf32> to vector<256x16xbf16>
    %cst = arith.constant dense<0.000000e+00> : vector<256x32xf32>
    %4 = tpu.matmul %3, %1, %cst {dimension_numbers = #tpu.dot_dimension_numbers<[1], [0], [0], [1], [0, 0, 1, 1], [], []>} : vector<256x16xbf16>, vector<16x32xbf16>, vector<256x32xf32> -> vector<256x32xf32>
    %5 = vector.broadcast %2 : vector<1x32xf32> to vector<256x32xf32>
    %6 = arith.addf %4, %5 : vector<256x32xf32>
    %cst_5 = arith.constant 0.000000e+00 : f32
    %7 = vector.broadcast %cst_5 : f32 to vector<256x32xf32>
    %8 = arith.maximumf %6, %7 : vector<256x32xf32>
    %c0_6 = arith.constant 0 : index
    %c0_7 = arith.constant 0 : index
    %9 = vector.load %arg4[%c0_6, %c0_7] : memref<32x32xbf16, #tpu.memory_space<vmem>>, vector<32x32xbf16>
    %c0_8 = arith.constant 0 : index
    %c0_9 = arith.constant 0 : index
    %10 = vector.load %arg5[%c0_8, %c0_9] : memref<1x32xf32, #tpu.memory_space<vmem>>, vector<1x32xf32>
    %11 = arith.truncf %8 : vector<256x32xf32> to vector<256x32xbf16>
    %cst_10 = arith.constant dense<0.000000e+00> : vector<256x32xf32>
    %12 = tpu.matmul %11, %9, %cst_10 {dimension_numbers = #tpu.dot_dimension_numbers<[1], [0], [0], [1], [0, 0, 1, 1], [], []>} : vector<256x32xbf16>, vector<32x32xbf16>, vector<256x32xf32> -> vector<256x32xf32>
    %13 = vector.broadcast %10 : vector<1x32xf32> to vector<256x32xf32>
    %14 = arith.addf %12, %13 : vector<256x32xf32>
    %cst_11 = arith.constant 0.000000e+00 : f32
    %15 = vector.broadcast %cst_11 : f32 to vector<256x32xf32>
    %16 = arith.maximumf %14, %15 : vector<256x32xf32>
    %c0_12 = arith.constant 0 : index
    %c0_13 = arith.constant 0 : index
    %17 = vector.load %arg6[%c0_12, %c0_13] : memref<32x32xbf16, #tpu.memory_space<vmem>>, vector<32x32xbf16>
    %c0_14 = arith.constant 0 : index
    %c0_15 = arith.constant 0 : index
    %18 = vector.load %arg7[%c0_14, %c0_15] : memref<1x32xf32, #tpu.memory_space<vmem>>, vector<1x32xf32>
    %19 = arith.truncf %16 : vector<256x32xf32> to vector<256x32xbf16>
    %cst_16 = arith.constant dense<0.000000e+00> : vector<256x32xf32>
    %20 = tpu.matmul %19, %17, %cst_16 {dimension_numbers = #tpu.dot_dimension_numbers<[1], [0], [0], [1], [0, 0, 1, 1], [], []>} : vector<256x32xbf16>, vector<32x32xbf16>, vector<256x32xf32> -> vector<256x32xf32>
    %21 = vector.broadcast %18 : vector<1x32xf32> to vector<256x32xf32>
    %22 = arith.addf %20, %21 : vector<256x32xf32>
    %cst_17 = arith.constant 0.000000e+00 : f32
    %23 = vector.broadcast %cst_17 : f32 to vector<256x32xf32>
    %24 = arith.maximumf %22, %23 : vector<256x32xf32>
    %c0_18 = arith.constant 0 : index
    %c0_19 = arith.constant 0 : index
    %25 = vector.load %arg8[%c0_18, %c0_19] : memref<32x32xbf16, #tpu.memory_space<vmem>>, vector<32x32xbf16>
    %c0_20 = arith.constant 0 : index
    %c0_21 = arith.constant 0 : index
    %26 = vector.load %arg9[%c0_20, %c0_21] : memref<1x32xf32, #tpu.memory_space<vmem>>, vector<1x32xf32>
    %27 = arith.truncf %24 : vector<256x32xf32> to vector<256x32xbf16>
    %cst_22 = arith.constant dense<0.000000e+00> : vector<256x32xf32>
    %28 = tpu.matmul %27, %25, %cst_22 {dimension_numbers = #tpu.dot_dimension_numbers<[1], [0], [0], [1], [0, 0, 1, 1], [], []>} : vector<256x32xbf16>, vector<32x32xbf16>, vector<256x32xf32> -> vector<256x32xf32>
    %29 = vector.broadcast %26 : vector<1x32xf32> to vector<256x32xf32>
    %30 = arith.addf %28, %29 : vector<256x32xf32>
    %cst_23 = arith.constant 0.000000e+00 : f32
    %31 = vector.broadcast %cst_23 : f32 to vector<256x32xf32>
    %32 = arith.maximumf %30, %31 : vector<256x32xf32>
    %c0_24 = arith.constant 0 : index
    %c0_25 = arith.constant 0 : index
    %33 = vector.load %arg10[%c0_24, %c0_25] : memref<32x8xbf16, #tpu.memory_space<vmem>>, vector<32x8xbf16>
    %c0_26 = arith.constant 0 : index
    %c0_27 = arith.constant 0 : index
    %34 = vector.load %arg11[%c0_26, %c0_27] : memref<1x8xf32, #tpu.memory_space<vmem>>, vector<1x8xf32>
    %35 = arith.truncf %32 : vector<256x32xf32> to vector<256x32xbf16>
    %cst_28 = arith.constant dense<0.000000e+00> : vector<256x8xf32>
    %36 = tpu.matmul %35, %33, %cst_28 {dimension_numbers = #tpu.dot_dimension_numbers<[1], [0], [0], [1], [0, 0, 1, 1], [], []>} : vector<256x32xbf16>, vector<32x8xbf16>, vector<256x8xf32> -> vector<256x8xf32>
    %37 = vector.broadcast %34 : vector<1x8xf32> to vector<256x8xf32>
    %38 = arith.addf %36, %37 : vector<256x8xf32>
    %c0_29 = arith.constant 0 : index
    %c0_30 = arith.constant 0 : index
    %39 = vector.load %arg12[%c0_29, %c0_30] : memref<256x8xf32, #tpu.memory_space<vmem>>, vector<256x8xf32>
    tpu.vector_store %arg12[%c0_29, %c0_30], %38 {strides = array<i32>} : memref<256x8xf32, #tpu.memory_space<vmem>>, vector<256x8xf32>,
    return
  }
  func.func @transform_0(%arg0: i32) -> (i32, i32) {
    %c0_i32 = arith.constant 0 : i32
    %c0_i32_0 = arith.constant 0 : i32
    return %arg0, %c0_i32 : i32, i32
  }
  func.func @transform_1(%arg0: i32) -> (i32, i32) {
    %c0_i32 = arith.constant 0 : i32
    %c0_i32_0 = arith.constant 0 : i32
    %c0_i32_1 = arith.constant 0 : i32
    return %c0_i32, %c0_i32_0 : i32, i32
  }
  func.func @transform_2(%arg0: i32) -> (i32, i32) {
    %c0_i32 = arith.constant 0 : i32
    %c0_i32_0 = arith.constant 0 : i32
    %c0_i32_1 = arith.constant 0 : i32
    return %c0_i32, %c0_i32_0 : i32, i32
  }
  func.func @transform_3(%arg0: i32) -> (i32, i32) {
    %c0_i32 = arith.constant 0 : i32
    %c0_i32_0 = arith.constant 0 : i32
    %c0_i32_1 = arith.constant 0 : i32
    return %c0_i32, %c0_i32_0 : i32, i32
  }
  func.func @transform_4(%arg0: i32) -> (i32, i32) {
    %c0_i32 = arith.constant 0 : i32
    %c0_i32_0 = arith.constant 0 : i32
    %c0_i32_1 = arith.constant 0 : i32
    return %c0_i32, %c0_i32_0 : i32, i32
  }
  func.func @transform_5(%arg0: i32) -> (i32, i32) {
    %c0_i32 = arith.constant 0 : i32
    %c0_i32_0 = arith.constant 0 : i32
    %c0_i32_1 = arith.constant 0 : i32
    return %c0_i32, %c0_i32_0 : i32, i32
  }
  func.func @transform_6(%arg0: i32) -> (i32, i32) {
    %c0_i32 = arith.constant 0 : i32
    %c0_i32_0 = arith.constant 0 : i32
    %c0_i32_1 = arith.constant 0 : i32
    return %c0_i32, %c0_i32_0 : i32, i32
  }
  func.func @transform_7(%arg0: i32) -> (i32, i32) {
    %c0_i32 = arith.constant 0 : i32
    %c0_i32_0 = arith.constant 0 : i32
    %c0_i32_1 = arith.constant 0 : i32
    return %c0_i32, %c0_i32_0 : i32, i32
  }
  func.func @transform_8(%arg0: i32) -> (i32, i32) {
    %c0_i32 = arith.constant 0 : i32
    %c0_i32_0 = arith.constant 0 : i32
    %c0_i32_1 = arith.constant 0 : i32
    return %c0_i32, %c0_i32_0 : i32, i32
  }
  func.func @transform_9(%arg0: i32) -> (i32, i32) {
    %c0_i32 = arith.constant 0 : i32
    %c0_i32_0 = arith.constant 0 : i32
    %c0_i32_1 = arith.constant 0 : i32
    return %c0_i32, %c0_i32_0 : i32, i32
  }
  func.func @transform_10(%arg0: i32) -> (i32, i32) {
    %c0_i32 = arith.constant 0 : i32
    %c0_i32_0 = arith.constant 0 : i32
    %c0_i32_1 = arith.constant 0 : i32
    return %c0_i32, %c0_i32_0 : i32, i32
  }
  func.func @transform_11(%arg0: i32) -> (i32, i32) {
    %c0_i32 = arith.constant 0 : i32
    %c0_i32_0 = arith.constant 0 : i32
    return %arg0, %c0_i32 : i32, i32
  }
}

</mosaic_0001>

<llo_original>
// kernel: mlp_forward.1
$region0: #{mlp_forward.1}
  #allocation0 [shape = 'u32[]', space=smem, size = 0x4, offset = 0x4, fixed_abs, tag = 'smem constant byte address 0x4 - core index']
  #allocation1 [shape = 'u32[144,128]{1,0:T(1,128)}', space=vmem, size = 0x12000, scoped, tag = 'internal scratch']
  %s0 = inlined_call_operand.vmem [shape: f32[256,16], index: 0, kind: input, shape index: {}]
  %s1 = inlined_call_operand.vmem [shape: bf16[16,32], index: 1, kind: input, shape index: {}]
  %s2 = inlined_call_operand.vmem [shape: f32[1,32], index: 2, kind: input, shape index: {}]
  %s3 = inlined_call_operand.vmem [shape: bf16[32,32], index: 3, kind: input, shape index: {}]
  %s4 = inlined_call_operand.vmem [shape: f32[1,32], index: 4, kind: input, shape index: {}]
  %s5 = inlined_call_operand.vmem [shape: bf16[32,32], index: 5, kind: input, shape index: {}]
  %s6 = inlined_call_operand.vmem [shape: f32[1,32], index: 6, kind: input, shape index: {}]
  %s7 = inlined_call_operand.vmem [shape: bf16[32,32], index: 7, kind: input, shape index: {}]
  %s8 = inlined_call_operand.vmem [shape: f32[1,32], index: 8, kind: input, shape index: {}]
  %s9 = inlined_call_operand.vmem [shape: bf16[32,8], index: 9, kind: input, shape index: {}]
  %s10 = inlined_call_operand.vmem [shape: f32[1,8], index: 10, kind: input, shape index: {}]
  %s11 = inlined_call_operand.vmem [shape: f32[256,8], index: 11, kind: output, shape index: {}]
  %s12 = sld [smem:[#allocation0]]
  $region54: #{mlp_forward.1} parent=0
    _
  %s14 = ssub.s32 1, %s12
  %s15 = scalar_select 0, %s14, %s12
  // Predicated region
  $region2: #{mlp_forward.1} parent=0 // pred_check
    _
  $region3: #{mlp_forward.1} parent=0 // pred_check_branch
    %17 = sbr.rel (0) target = $region5
  $region4: #{mlp_forward.1} parent=0 // pred_region
    _
  $region5: #{mlp_forward.1} parent=0 // pred_fallthru
    _
  // Predicated region
  $region6: #{mlp_forward.1} parent=0 // pred_check
    _
  $region7: #{mlp_forward.1} parent=0 // pred_check_branch
    %19 = sbr.rel (0) target = $region9
  $region8: #{mlp_forward.1} parent=0 // pred_region
    _
  $region9: #{mlp_forward.1} parent=0 // pred_fallthru
    _
  // Predicated region
  $region10: #{mlp_forward.1} parent=0 // pred_check
    _
  $region11: #{mlp_forward.1} parent=0 // pred_check_branch
    %21 = sbr.rel (0) target = $region13
  $region12: #{mlp_forward.1} parent=0 // pred_region
    _
  $region13: #{mlp_forward.1} parent=0 // pred_fallthru
    _
  // Predicated region
  $region14: #{mlp_forward.1} parent=0 // pred_check
    _
  $region15: #{mlp_forward.1} parent=0 // pred_check_branch
    %23 = sbr.rel (0) target = $region17
  $region16: #{mlp_forward.1} parent=0 // pred_region
    _
  $region17: #{mlp_forward.1} parent=0 // pred_fallthru
    _
  // Predicated region
  $region18: #{mlp_forward.1} parent=0 // pred_check
    _
  $region19: #{mlp_forward.1} parent=0 // pred_check_branch
    %25 = sbr.rel (0) target = $region21
  $region20: #{mlp_forward.1} parent=0 // pred_region
    _
  $region21: #{mlp_forward.1} parent=0 // pred_fallthru
    _
  // Predicated region
  $region22: #{mlp_forward.1} parent=0 // pred_check
    _
  $region23: #{mlp_forward.1} parent=0 // pred_check_branch
    %27 = sbr.rel (0) target = $region25
  $region24: #{mlp_forward.1} parent=0 // pred_region
    _
  $region25: #{mlp_forward.1} parent=0 // pred_fallthru
    _
  // Predicated region
  $region26: #{mlp_forward.1} parent=0 // pred_check
    _
  $region27: #{mlp_forward.1} parent=0 // pred_check_branch
    %29 = sbr.rel (0) target = $region29
  $region28: #{mlp_forward.1} parent=0 // pred_region
    _
  $region29: #{mlp_forward.1} parent=0 // pred_fallthru
    _
  // Predicated region
  $region30: #{mlp_forward.1} parent=0 // pred_check
    _
  $region31: #{mlp_forward.1} parent=0 // pred_check_branch
    %31 = sbr.rel (0) target = $region33
  $region32: #{mlp_forward.1} parent=0 // pred_region
    _
  $region33: #{mlp_forward.1} parent=0 // pred_fallthru
    _
  // Predicated region
  $region34: #{mlp_forward.1} parent=0 // pred_check
    _
  $region35: #{mlp_forward.1} parent=0 // pred_check_branch
    %33 = sbr.rel (0) target = $region37
  $region36: #{mlp_forward.1} parent=0 // pred_region
    _
  $region37: #{mlp_forward.1} parent=0 // pred_fallthru
    _
  // Predicated region
  $region38: #{mlp_forward.1} parent=0 // pred_check
    _
  $region39: #{mlp_forward.1} parent=0 // pred_check_branch
    %35 = sbr.rel (0) target = $region41
  $region40: #{mlp_forward.1} parent=0 // pred_region
    _
  $region41: #{mlp_forward.1} parent=0 // pred_fallthru
    _
  // Predicated region
  $region42: #{mlp_forward.1} parent=0 // pred_check
    _
  $region43: #{mlp_forward.1} parent=0 // pred_check_branch
    %37 = sbr.rel (0) target = $region45
  $region44: #{mlp_forward.1} parent=0 // pred_region
    _
  $region45: #{mlp_forward.1} parent=0 // pred_fallthru
    _
  %v39 = vld [vmem:[%s0] sm:$0xff]
  %v40 = vld [vmem:[%s0 + $0x8] sm:$0xff]
  %v41 = vld [vmem:[%s0 + $0x10] sm:$0xff]
  %v42 = vld [vmem:[%s0 + $0x18] sm:$0xff]
  %v43 = vld [vmem:[%s0 + $0x20] sm:$0xff]
  %v44 = vld [vmem:[%s0 + $0x28] sm:$0xff]
  %v45 = vld [vmem:[%s0 + $0x30] sm:$0xff]
  %v46 = vld [vmem:[%s0 + $0x38] sm:$0xff]
  %v47 = vld [vmem:[%s0 + $0x40] sm:$0xff]
  %v48 = vld [vmem:[%s0 + $0x48] sm:$0xff]
  %v49 = vld [vmem:[%s0 + $0x50] sm:$0xff]
  %v50 = vld [vmem:[%s0 + $0x58] sm:$0xff]
  %v51 = vld [vmem:[%s0 + $0x60] sm:$0xff]
  %v52 = vld [vmem:[%s0 + $0x68] sm:$0xff]
  %v53 = vld [vmem:[%s0 + $0x70] sm:$0xff]
  %v54 = vld [vmem:[%s0 + $0x78] sm:$0xff]
  %v55 = vld [vmem:[%s0 + $0x80] sm:$0xff]
  %v56 = vld [vmem:[%s0 + $0x88] sm:$0xff]
  %v57 = vld [vmem:[%s0 + $0x90] sm:$0xff]
  %v58 = vld [vmem:[%s0 + $0x98] sm:$0xff]
  %v59 = vld [vmem:[%s0 + $0xa0] sm:$0xff]
  %v60 = vld [vmem:[%s0 + $0xa8] sm:$0xff]
  %v61 = vld [vmem:[%s0 + $0xb0] sm:$0xff]
  %v62 = vld [vmem:[%s0 + $0xb8] sm:$0xff]
  %v63 = vld [vmem:[%s0 + $0xc0] sm:$0xff]
  %v64 = vld [vmem:[%s0 + $0xc8] sm:$0xff]
  %v65 = vld [vmem:[%s0 + $0xd0] sm:$0xff]
  %v66 = vld [vmem:[%s0 + $0xd8] sm:$0xff]
  %v67 = vld [vmem:[%s0 + $0xe0] sm:$0xff]
  %v68 = vld [vmem:[%s0 + $0xe8] sm:$0xff]
  %v69 = vld [vmem:[%s0 + $0xf0] sm:$0xff]
  %v70 = vld [vmem:[%s0 + $0xf8] sm:$0xff]
  %v71 = vld [vmem:[%s1] sm:$0xf]
  %v72 = vld [vmem:[%s1 + $0x4] sm:$0xf]
  %v73 = vld [vmem:[%s2] sm:$0x1]
  %v74 = vpack.c.bf16 %v40, %v39
  %v75 = vpack.c.bf16 %v42, %v41
  %v76 = vpack.c.bf16 %v44, %v43
  %v77 = vpack.c.bf16 %v46, %v45
  %v78 = vpack.c.bf16 %v48, %v47
  %v79 = vpack.c.bf16 %v50, %v49
  %v80 = vpack.c.bf16 %v52, %v51
  %v81 = vpack.c.bf16 %v54, %v53
  %v82 = vpack.c.bf16 %v56, %v55
  %v83 = vpack.c.bf16 %v58, %v57
  %v84 = vpack.c.bf16 %v60, %v59
  %v85 = vpack.c.bf16 %v62, %v61
  %v86 = vpack.c.bf16 %v64, %v63
  %v87 = vpack.c.bf16 %v66, %v65
  %v88 = vpack.c.bf16 %v68, %v67
  %v89 = vpack.c.bf16 %v70, %v69
  %v91 = vlaneseq
  %v92 = vshrl.u32 %v91, 7
  %v93 = vsub.s32 0, %v92
  %v94 = vrot.slane %v73, %v93
  %v98 = vunpack.c.l.b16 %v71
  %v99 = vunpack.c.l.b16 %v72
  %v100 = vpack.c.b16 %v99, %v98
  %vm102 = vcmask 130048
  %v104 = vsel %vm102, %v74, 0
  %v107 = vsel %vm102, %v75, 0
  %v110 = vsel %vm102, %v76, 0
  %v113 = vsel %vm102, %v77, 0
  %v116 = vsel %vm102, %v78, 0
  %v119 = vsel %vm102, %v79, 0
  %v122 = vsel %vm102, %v80, 0
  %v125 = vsel %vm102, %v81, 0
  %v128 = vsel %vm102, %v82, 0
  %v131 = vsel %vm102, %v83, 0
  %v134 = vsel %vm102, %v84, 0
  %v137 = vsel %vm102, %v85, 0
  %v140 = vsel %vm102, %v86, 0
  %v143 = vsel %vm102, %v87, 0
  %v146 = vsel %vm102, %v88, 0
  %v149 = vsel %vm102, %v89, 0
  %151 = vmatprep.subr.bf16.mxu0 0
  %152 = vmatpush1.bf16.msra.mxu0 0
  %153 = vmatprep.subr.bf16.mxu0 0
  %154 = vmatpush1.bf16.msra.mxu0 0
  %155 = vmatprep.subr.bf16.mxu0 0
  %156 = vmatpush1.bf16.msra.mxu0 0
  %157 = vmatprep.subr.bf16.mxu0 0
  %158 = vmatpush1.bf16.msra.mxu0 0
  %159 = vmatprep.subr.bf16.mxu0 0
  %160 = vmatpush1.bf16.msra.mxu0 0
  %161 = vmatprep.subr.bf16.mxu0 0
  %162 = vmatpush1.bf16.msra.mxu0 0
  %163 = vmatprep.subr.bf16.mxu0 0
  %164 = vmatpush1.bf16.msra.mxu0 0
  %165 = vmatprep.subr.bf16.mxu0 0
  %166 = vmatpush1.bf16.msra.mxu0 %v100
  %167 = vmatprep.subr.bf16.mxu0 0
  %168 = vmatpush2.bf16.msra.mxu0 0
  %169 = vmatprep.subr.bf16.mxu0 0
  %170 = vmatpush2.bf16.msra.mxu0 0
  %171 = vmatprep.subr.bf16.mxu0 0
  %172 = vmatpush2.bf16.msra.mxu0 0
  %173 = vmatprep.subr.bf16.mxu0 0
  %174 = vmatpush2.bf16.msra.mxu0 0
  %175 = vmatprep.subr.bf16.mxu0 0
  %176 = vmatpush2.bf16.msra.mxu0 0
  %177 = vmatprep.subr.bf16.mxu0 0
  %178 = vmatpush2.bf16.msra.mxu0 0
  %179 = vmatprep.subr.bf16.mxu0 0
  %180 = vmatpush2.bf16.msra.mxu0 0
  %181 = vmatprep.subr.bf16.mxu0 0
  %182 = vmatpush2.bf16.msra.mxu0 0
  %183 = vmatprep.mubr.bf16.mxu0 0
  %184 = vmatmul.mubr.bf16.gmra.mxu0 %v104
  %v185 = vpop.f32.mrf.mxu0
  %v186 = vadd.f32 %v94, %v185
  %v187 = vpop.f32.mrf.mxu0
  %v188 = vpop.f32.mrf.mxu0
  %v189 = vadd.f32 %v94, %v188
  %v190 = vpop.f32.mrf.mxu0
  %191 = vmatprep.mubr.bf16.mxu0 0
  %192 = vmatmul.mubr.bf16.gmra.mxu0 %v107
  %v193 = vpop.f32.mrf.mxu0
  %v194 = vadd.f32 %v94, %v193
  %v195 = vpop.f32.mrf.mxu0
  %v196 = vpop.f32.mrf.mxu0
  %v197 = vadd.f32 %v94, %v196
  %v198 = vpop.f32.mrf.mxu0
  %199 = vmatprep.mubr.bf16.mxu0 0
  %200 = vmatmul.mubr.bf16.gmra.mxu0 %v110
  %v201 = vpop.f32.mrf.mxu0
  %v202 = vadd.f32 %v94, %v201
  %v203 = vpop.f32.mrf.mxu0
  %v204 = vpop.f32.mrf.mxu0
  %v205 = vadd.f32 %v94, %v204
  %v206 = vpop.f32.mrf.mxu0
  %207 = vmatprep.mubr.bf16.mxu0 0
  %208 = vmatmul.mubr.bf16.gmra.mxu0 %v113
  %v209 = vpop.f32.mrf.mxu0
  %v210 = vadd.f32 %v94, %v209
  %v211 = vpop.f32.mrf.mxu0
  %v212 = vpop.f32.mrf.mxu0
  %v213 = vadd.f32 %v94, %v212
  %v214 = vpop.f32.mrf.mxu0
  %215 = vmatprep.mubr.bf16.mxu0 0
  %216 = vmatmul.mubr.bf16.gmra.mxu0 %v116
  %v217 = vpop.f32.mrf.mxu0
  %v218 = vadd.f32 %v94, %v217
  %v219 = vpop.f32.mrf.mxu0
  %v220 = vpop.f32.mrf.mxu0
  %v221 = vadd.f32 %v94, %v220
  %v222 = vpop.f32.mrf.mxu0
  %223 = vmatprep.mubr.bf16.mxu0 0
  %224 = vmatmul.mubr.bf16.gmra.mxu0 %v119
  %v225 = vpop.f32.mrf.mxu0
  %v226 = vadd.f32 %v94, %v225
  %v227 = vpop.f32.mrf.mxu0
  %v228 = vpop.f32.mrf.mxu0
  %v229 = vadd.f32 %v94, %v228
  %v230 = vpop.f32.mrf.mxu0
  %231 = vmatprep.mubr.bf16.mxu0 0
  %232 = vmatmul.mubr.bf16.gmra.mxu0 %v122
  %v233 = vpop.f32.mrf.mxu0
  %v234 = vadd.f32 %v94, %v233
  %v235 = vpop.f32.mrf.mxu0
  %v236 = vpop.f32.mrf.mxu0
  %v237 = vadd.f32 %v94, %v236
  %v238 = vpop.f32.mrf.mxu0
  %239 = vmatprep.mubr.bf16.mxu0 0
  %240 = vmatmul.mubr.bf16.gmra.mxu0 %v125
  %v241 = vpop.f32.mrf.mxu0
  %v242 = vadd.f32 %v94, %v241
  %v243 = vpop.f32.mrf.mxu0
  %v244 = vpop.f32.mrf.mxu0
  %v245 = vadd.f32 %v94, %v244
  %v246 = vpop.f32.mrf.mxu0
  %247 = vmatprep.mubr.bf16.mxu0 0
  %248 = vmatmul.mubr.bf16.gmra.mxu0 %v128
  %v249 = vpop.f32.mrf.mxu0
  %v250 = vadd.f32 %v94, %v249
  %v251 = vpop.f32.mrf.mxu0
  %v252 = vpop.f32.mrf.mxu0
  %v253 = vadd.f32 %v94, %v252
  %v254 = vpop.f32.mrf.mxu0
  %255 = vmatprep.mubr.bf16.mxu0 0
  %256 = vmatmul.mubr.bf16.gmra.mxu0 %v131
  %v257 = vpop.f32.mrf.mxu0
  %v258 = vadd.f32 %v94, %v257
  %v259 = vpop.f32.mrf.mxu0
  %v260 = vpop.f32.mrf.mxu0
  %v261 = vadd.f32 %v94, %v260
  %v262 = vpop.f32.mrf.mxu0
  %263 = vmatprep.mubr.bf16.mxu0 0
  %264 = vmatmul.mubr.bf16.gmra.mxu0 %v134
  %v265 = vpop.f32.mrf.mxu0
  %v266 = vadd.f32 %v94, %v265
  %v267 = vpop.f32.mrf.mxu0
  %v268 = vpop.f32.mrf.mxu0
  %v269 = vadd.f32 %v94, %v268
  %v270 = vpop.f32.mrf.mxu0
  %271 = vmatprep.mubr.bf16.mxu0 0
  %272 = vmatmul.mubr.bf16.gmra.mxu0 %v137
  %v273 = vpop.f32.mrf.mxu0
  %v274 = vadd.f32 %v94, %v273
  %v275 = vpop.f32.mrf.mxu0
  %v276 = vpop.f32.mrf.mxu0
  %v277 = vadd.f32 %v94, %v276
  %v278 = vpop.f32.mrf.mxu0
  %279 = vmatprep.mubr.bf16.mxu0 0
  %280 = vmatmul.mubr.bf16.gmra.mxu0 %v140
  %v281 = vpop.f32.mrf.mxu0
  %v282 = vadd.f32 %v94, %v281
  %v283 = vpop.f32.mrf.mxu0
  %v284 = vpop.f32.mrf.mxu0
  %v285 = vadd.f32 %v94, %v284
  %v286 = vpop.f32.mrf.mxu0
  %287 = vmatprep.mubr.bf16.mxu0 0
  %288 = vmatmul.mubr.bf16.gmra.mxu0 %v143
  %v289 = vpop.f32.mrf.mxu0
  %v290 = vadd.f32 %v94, %v289
  %v291 = vpop.f32.mrf.mxu0
  %v292 = vpop.f32.mrf.mxu0
  %v293 = vadd.f32 %v94, %v292
  %v294 = vpop.f32.mrf.mxu0
  %295 = vmatprep.mubr.bf16.mxu0 0
  %296 = vmatmul.mubr.bf16.gmra.mxu0 %v146
  %v297 = vpop.f32.mrf.mxu0
  %v298 = vadd.f32 %v94, %v297
  %v299 = vpop.f32.mrf.mxu0
  %v300 = vpop.f32.mrf.mxu0
  %v301 = vadd.f32 %v94, %v300
  %v302 = vpop.f32.mrf.mxu0
  %303 = vmatprep.mubr.bf16.mxu0 0
  %304 = vmatmul.mubr.bf16.gmra.mxu0 %v149
  %v305 = vpop.f32.mrf.mxu0
  %v306 = vadd.f32 %v94, %v305
  %v307 = vpop.f32.mrf.mxu0
  %v308 = vpop.f32.mrf.mxu0
  %v309 = vadd.f32 %v94, %v308
  %v310 = vpop.f32.mrf.mxu0
  %311 = vdwg.mxu0
  %v312 = vmax.f32 %v186, 0.0
  %v313 = vmax.f32 %v189, 0.0
  %v314 = vmax.f32 %v194, 0.0
  %v315 = vmax.f32 %v197, 0.0
  %v316 = vmax.f32 %v202, 0.0
  %v317 = vmax.f32 %v205, 0.0
  %v318 = vmax.f32 %v210, 0.0
  %v319 = vmax.f32 %v213, 0.0
  %v320 = vmax.f32 %v218, 0.0
  %v321 = vmax.f32 %v221, 0.0
  %v322 = vmax.f32 %v226, 0.0
  %v323 = vmax.f32 %v229, 0.0
  %v324 = vmax.f32 %v234, 0.0
  %v325 = vmax.f32 %v237, 0.0
  %v326 = vmax.f32 %v242, 0.0
  %v327 = vmax.f32 %v245, 0.0
  %v328 = vmax.f32 %v250, 0.0
  %v329 = vmax.f32 %v253, 0.0
  %v330 = vmax.f32 %v258, 0.0
  %v331 = vmax.f32 %v261, 0.0
  %v332 = vmax.f32 %v266, 0.0
  %v333 = vmax.f32 %v269, 0.0
  %v334 = vmax.f32 %v274, 0.0
  %v335 = vmax.f32 %v277, 0.0
  %v336 = vmax.f32 %v282, 0.0
  %v337 = vmax.f32 %v285, 0.0
  %v338 = vmax.f32 %v290, 0.0
  %v339 = vmax.f32 %v293, 0.0
  %v340 = vmax.f32 %v298, 0.0
  %v341 = vmax.f32 %v301, 0.0
  %v342 = vmax.f32 %v306, 0.0
  %v343 = vmax.f32 %v309, 0.0
  %v344 = vld [vmem:[%s3] sm:$0xf]
  %v345 = vld [vmem:[%s3 + $0x4] sm:$0xf]
  %v346 = vld [vmem:[%s3 + $0x8] sm:$0xf]
  %v347 = vld [vmem:[%s3 + $0xc] sm:$0xf]
  %v348 = vld [vmem:[%s4] sm:$0x1]
  %v349 = vpack.c.bf16 %v313, %v312
  %v350 = vpack.c.bf16 %v315, %v314
  %v351 = vpack.c.bf16 %v317, %v316
  %v352 = vpack.c.bf16 %v319, %v318
  %v353 = vpack.c.bf16 %v321, %v320
  %v354 = vpack.c.bf16 %v323, %v322
  %v355 = vpack.c.bf16 %v325, %v324
  %v356 = vpack.c.bf16 %v327, %v326
  %v357 = vpack.c.bf16 %v329, %v328
  %v358 = vpack.c.bf16 %v331, %v330
  %v359 = vpack.c.bf16 %v333, %v332
  %v360 = vpack.c.bf16 %v335, %v334
  %v361 = vpack.c.bf16 %v337, %v336
  %v362 = vpack.c.bf16 %v339, %v338
  %v363 = vpack.c.bf16 %v341, %v340
  %v364 = vpack.c.bf16 %v343, %v342
  %v366 = vlaneseq
  %v367 = vshrl.u32 %v366, 7
  %v368 = vsub.s32 0, %v367
  %v369 = vrot.slane %v348, %v368
  %v375 = vunpack.c.l.b16 %v344
  %v376 = vunpack.c.l.b16 %v345
  %v377 = vunpack.c.l.b16 %v346
  %v378 = vunpack.c.l.b16 %v347
  %v379 = vpack.c.b16 %v376, %v375
  %v380 = vpack.c.b16 %v378, %v377
  %vm383 = vcmask 261120
  %v385 = vsel %vm383, %v349, 0
  %v388 = vsel %vm383, %v350, 0
  %v391 = vsel %vm383, %v351, 0
  %v394 = vsel %vm383, %v352, 0
  %v397 = vsel %vm383, %v353, 0
  %v400 = vsel %vm383, %v354, 0
  %v403 = vsel %vm383, %v355, 0
  %v406 = vsel %vm383, %v356, 0
  %v409 = vsel %vm383, %v357, 0
  %v412 = vsel %vm383, %v358, 0
  %v415 = vsel %vm383, %v359, 0
  %v418 = vsel %vm383, %v360, 0
  %v421 = vsel %vm383, %v361, 0
  %v424 = vsel %vm383, %v362, 0
  %v427 = vsel %vm383, %v363, 0
  %v430 = vsel %vm383, %v364, 0
  %432 = vmatprep.subr.bf16.mxu0 0
  %433 = vmatpush1.bf16.msra.mxu0 0
  %434 = vmatprep.subr.bf16.mxu0 0
  %435 = vmatpush1.bf16.msra.mxu0 0
  %436 = vmatprep.subr.bf16.mxu0 0
  %437 = vmatpush1.bf16.msra.mxu0 0
  %438 = vmatprep.subr.bf16.mxu0 0
  %439 = vmatpush1.bf16.msra.mxu0 0
  %440 = vmatprep.subr.bf16.mxu0 0
  %441 = vmatpush1.bf16.msra.mxu0 0
  %442 = vmatprep.subr.bf16.mxu0 0
  %443 = vmatpush1.bf16.msra.mxu0 0
  %444 = vmatprep.subr.bf16.mxu0 0
  %445 = vmatpush1.bf16.msra.mxu0 %v380
  %446 = vmatprep.subr.bf16.mxu0 0
  %447 = vmatpush1.bf16.msra.mxu0 %v379
  %448 = vmatprep.subr.bf16.mxu0 0
  %449 = vmatpush2.bf16.msra.mxu0 0
  %450 = vmatprep.subr.bf16.mxu0 0
  %451 = vmatpush2.bf16.msra.mxu0 0
  %452 = vmatprep.subr.bf16.mxu0 0
  %453 = vmatpush2.bf16.msra.mxu0 0
  %454 = vmatprep.subr.bf16.mxu0 0
  %455 = vmatpush2.bf16.msra.mxu0 0
  %456 = vmatprep.subr.bf16.mxu0 0
  %457 = vmatpush2.bf16.msra.mxu0 0
  %458 = vmatprep.subr.bf16.mxu0 0
  %459 = vmatpush2.bf16.msra.mxu0 0
  %460 = vmatprep.subr.bf16.mxu0 0
  %461 = vmatpush2.bf16.msra.mxu0 0
  %462 = vmatprep.subr.bf16.mxu0 0
  %463 = vmatpush2.bf16.msra.mxu0 0
  %464 = vmatprep.mubr.bf16.mxu0 0
  %465 = vmatmul.mubr.bf16.gmra.mxu0 %v385
  %v466 = vpop.f32.mrf.mxu0
  %v467 = vadd.f32 %v369, %v466
  %v468 = vpop.f32.mrf.mxu0
  %v469 = vpop.f32.mrf.mxu0
  %v470 = vadd.f32 %v369, %v469
  %v471 = vpop.f32.mrf.mxu0
  %472 = vmatprep.mubr.bf16.mxu0 0
  %473 = vmatmul.mubr.bf16.gmra.mxu0 %v388
  %v474 = vpop.f32.mrf.mxu0
  %v475 = vadd.f32 %v369, %v474
  %v476 = vpop.f32.mrf.mxu0
  %v477 = vpop.f32.mrf.mxu0
  %v478 = vadd.f32 %v369, %v477
  %v479 = vpop.f32.mrf.mxu0
  %480 = vmatprep.mubr.bf16.mxu0 0
  %481 = vmatmul.mubr.bf16.gmra.mxu0 %v391
  %v482 = vpop.f32.mrf.mxu0
  %v483 = vadd.f32 %v369, %v482
  %v484 = vpop.f32.mrf.mxu0
  %v485 = vpop.f32.mrf.mxu0
  %v486 = vadd.f32 %v369, %v485
  %v487 = vpop.f32.mrf.mxu0
  %488 = vmatprep.mubr.bf16.mxu0 0
  %489 = vmatmul.mubr.bf16.gmra.mxu0 %v394
  %v490 = vpop.f32.mrf.mxu0
  %v491 = vadd.f32 %v369, %v490
  %v492 = vpop.f32.mrf.mxu0
  %v493 = vpop.f32.mrf.mxu0
  %v494 = vadd.f32 %v369, %v493
  %v495 = vpop.f32.mrf.mxu0
  %496 = vmatprep.mubr.bf16.mxu0 0
  %497 = vmatmul.mubr.bf16.gmra.mxu0 %v397
  %v498 = vpop.f32.mrf.mxu0
  %v499 = vadd.f32 %v369, %v498
  %v500 = vpop.f32.mrf.mxu0
  %v501 = vpop.f32.mrf.mxu0
  %v502 = vadd.f32 %v369, %v501
  %v503 = vpop.f32.mrf.mxu0
  %504 = vmatprep.mubr.bf16.mxu0 0
  %505 = vmatmul.mubr.bf16.gmra.mxu0 %v400
  %v506 = vpop.f32.mrf.mxu0
  %v507 = vadd.f32 %v369, %v506
  %v508 = vpop.f32.mrf.mxu0
  %v509 = vpop.f32.mrf.mxu0
  %v510 = vadd.f32 %v369, %v509
  %v511 = vpop.f32.mrf.mxu0
  %512 = vmatprep.mubr.bf16.mxu0 0
  %513 = vmatmul.mubr.bf16.gmra.mxu0 %v403
  %v514 = vpop.f32.mrf.mxu0
  %v515 = vadd.f32 %v369, %v514
  %v516 = vpop.f32.mrf.mxu0
  %v517 = vpop.f32.mrf.mxu0
  %v518 = vadd.f32 %v369, %v517
  %v519 = vpop.f32.mrf.mxu0
  %520 = vmatprep.mubr.bf16.mxu0 0
  %521 = vmatmul.mubr.bf16.gmra.mxu0 %v406
  %v522 = vpop.f32.mrf.mxu0
  %v523 = vadd.f32 %v369, %v522
  %v524 = vpop.f32.mrf.mxu0
  %v525 = vpop.f32.mrf.mxu0
  %v526 = vadd.f32 %v369, %v525
  %v527 = vpop.f32.mrf.mxu0
  %528 = vmatprep.mubr.bf16.mxu0 0
  %529 = vmatmul.mubr.bf16.gmra.mxu0 %v409
  %v530 = vpop.f32.mrf.mxu0
  %v531 = vadd.f32 %v369, %v530
  %v532 = vpop.f32.mrf.mxu0
  %v533 = vpop.f32.mrf.mxu0
  %v534 = vadd.f32 %v369, %v533
  %v535 = vpop.f32.mrf.mxu0
  %536 = vmatprep.mubr.bf16.mxu0 0
  %537 = vmatmul.mubr.bf16.gmra.mxu0 %v412
  %v538 = vpop.f32.mrf.mxu0
  %v539 = vadd.f32 %v369, %v538
  %v540 = vpop.f32.mrf.mxu0
  %v541 = vpop.f32.mrf.mxu0
  %v542 = vadd.f32 %v369, %v541
  %v543 = vpop.f32.mrf.mxu0
  %544 = vmatprep.mubr.bf16.mxu0 0
  %545 = vmatmul.mubr.bf16.gmra.mxu0 %v415
  %v546 = vpop.f32.mrf.mxu0
  %v547 = vadd.f32 %v369, %v546
  %v548 = vpop.f32.mrf.mxu0
  %v549 = vpop.f32.mrf.mxu0
  %v550 = vadd.f32 %v369, %v549
  %v551 = vpop.f32.mrf.mxu0
  %552 = vmatprep.mubr.bf16.mxu0 0
  %553 = vmatmul.mubr.bf16.gmra.mxu0 %v418
  %v554 = vpop.f32.mrf.mxu0
  %v555 = vadd.f32 %v369, %v554
  %v556 = vpop.f32.mrf.mxu0
  %v557 = vpop.f32.mrf.mxu0
  %v558 = vadd.f32 %v369, %v557
  %v559 = vpop.f32.mrf.mxu0
  %560 = vmatprep.mubr.bf16.mxu0 0
  %561 = vmatmul.mubr.bf16.gmra.mxu0 %v421
  %v562 = vpop.f32.mrf.mxu0
  %v563 = vadd.f32 %v369, %v562
  %v564 = vpop.f32.mrf.mxu0
  %v565 = vpop.f32.mrf.mxu0
  %v566 = vadd.f32 %v369, %v565
  %v567 = vpop.f32.mrf.mxu0
  %568 = vmatprep.mubr.bf16.mxu0 0
  %569 = vmatmul.mubr.bf16.gmra.mxu0 %v424
  %v570 = vpop.f32.mrf.mxu0
  %v571 = vadd.f32 %v369, %v570
  %v572 = vpop.f32.mrf.mxu0
  %v573 = vpop.f32.mrf.mxu0
  %v574 = vadd.f32 %v369, %v573
  %v575 = vpop.f32.mrf.mxu0
  %576 = vmatprep.mubr.bf16.mxu0 0
  %577 = vmatmul.mubr.bf16.gmra.mxu0 %v427
  %v578 = vpop.f32.mrf.mxu0
  %v579 = vadd.f32 %v369, %v578
  %v580 = vpop.f32.mrf.mxu0
  %v581 = vpop.f32.mrf.mxu0
  %v582 = vadd.f32 %v369, %v581
  %v583 = vpop.f32.mrf.mxu0
  %584 = vmatprep.mubr.bf16.mxu0 0
  %585 = vmatmul.mubr.bf16.gmra.mxu0 %v430
  %v586 = vpop.f32.mrf.mxu0
  %v587 = vadd.f32 %v369, %v586
  %v588 = vpop.f32.mrf.mxu0
  %v589 = vpop.f32.mrf.mxu0
  %v590 = vadd.f32 %v369, %v589
  %v591 = vpop.f32.mrf.mxu0
  %592 = vdwg.mxu0
  %v593 = vmax.f32 %v467, 0.0
  %v594 = vmax.f32 %v470, 0.0
  %v595 = vmax.f32 %v475, 0.0
  %v596 = vmax.f32 %v478, 0.0
  %v597 = vmax.f32 %v483, 0.0
  %v598 = vmax.f32 %v486, 0.0
  %v599 = vmax.f32 %v491, 0.0
  %v600 = vmax.f32 %v494, 0.0
  %v601 = vmax.f32 %v499, 0.0
  %v602 = vmax.f32 %v502, 0.0
  %v603 = vmax.f32 %v507, 0.0
  %v604 = vmax.f32 %v510, 0.0
  %v605 = vmax.f32 %v515, 0.0
  %v606 = vmax.f32 %v518, 0.0
  %v607 = vmax.f32 %v523, 0.0
  %v608 = vmax.f32 %v526, 0.0
  %v609 = vmax.f32 %v531, 0.0
  %v610 = vmax.f32 %v534, 0.0
  %v611 = vmax.f32 %v539, 0.0
  %v612 = vmax.f32 %v542, 0.0
  %v613 = vmax.f32 %v547, 0.0
  %v614 = vmax.f32 %v550, 0.0
  %v615 = vmax.f32 %v555, 0.0
  %v616 = vmax.f32 %v558, 0.0
  %v617 = vmax.f32 %v563, 0.0
  %v618 = vmax.f32 %v566, 0.0
  %v619 = vmax.f32 %v571, 0.0
  %v620 = vmax.f32 %v574, 0.0
  %v621 = vmax.f32 %v579, 0.0
  %v622 = vmax.f32 %v582, 0.0
  %v623 = vmax.f32 %v587, 0.0
  %v624 = vmax.f32 %v590, 0.0
  %v625 = vld [vmem:[%s5] sm:$0xf]
  %v626 = vld [vmem:[%s5 + $0x4] sm:$0xf]
  %v627 = vld [vmem:[%s5 + $0x8] sm:$0xf]
  %v628 = vld [vmem:[%s5 + $0xc] sm:$0xf]
  %v629 = vld [vmem:[%s6] sm:$0x1]
  %v630 = vpack.c.bf16 %v594, %v593
  %v631 = vpack.c.bf16 %v596, %v595
  %v632 = vpack.c.bf16 %v598, %v597
  %v633 = vpack.c.bf16 %v600, %v599
  %v634 = vpack.c.bf16 %v602, %v601
  %v635 = vpack.c.bf16 %v604, %v603
  %v636 = vpack.c.bf16 %v606, %v605
  %v637 = vpack.c.bf16 %v608, %v607
  %v638 = vpack.c.bf16 %v610, %v609
  %v639 = vpack.c.bf16 %v612, %v611
  %v640 = vpack.c.bf16 %v614, %v613
  %v641 = vpack.c.bf16 %v616, %v615
  %v642 = vpack.c.bf16 %v618, %v617
  %v643 = vpack.c.bf16 %v620, %v619
  %v644 = vpack.c.bf16 %v622, %v621
  %v645 = vpack.c.bf16 %v624, %v623
  %v647 = vlaneseq
  %v648 = vshrl.u32 %v647, 7
  %v649 = vsub.s32 0, %v648
  %v650 = vrot.slane %v629, %v649
  %v656 = vunpack.c.l.b16 %v625
  %v657 = vunpack.c.l.b16 %v626
  %v658 = vunpack.c.l.b16 %v627
  %v659 = vunpack.c.l.b16 %v628
  %v660 = vpack.c.b16 %v657, %v656
  %v661 = vpack.c.b16 %v659, %v658
  %v665 = vsel %vm383, %v630, 0
  %v668 = vsel %vm383, %v631, 0
  %v671 = vsel %vm383, %v632, 0
  %v674 = vsel %vm383, %v633, 0
  %v677 = vsel %vm383, %v634, 0
  %v680 = vsel %vm383, %v635, 0
  %v683 = vsel %vm383, %v636, 0
  %v686 = vsel %vm383, %v637, 0
  %v689 = vsel %vm383, %v638, 0
  %v692 = vsel %vm383, %v639, 0
  %v695 = vsel %vm383, %v640, 0
  %v698 = vsel %vm383, %v641, 0
  %v701 = vsel %vm383, %v642, 0
  %v704 = vsel %vm383, %v643, 0
  %v707 = vsel %vm383, %v644, 0
  %v710 = vsel %vm383, %v645, 0
  %712 = vmatprep.subr.bf16.mxu0 0
  %713 = vmatpush1.bf16.msra.mxu0 0
  %714 = vmatprep.subr.bf16.mxu0 0
  %715 = vmatpush1.bf16.msra.mxu0 0
  %716 = vmatprep.subr.bf16.mxu0 0
  %717 = vmatpush1.bf16.msra.mxu0 0
  %718 = vmatprep.subr.bf16.mxu0 0
  %719 = vmatpush1.bf16.msra.mxu0 0
  %720 = vmatprep.subr.bf16.mxu0 0
  %721 = vmatpush1.bf16.msra.mxu0 0
  %722 = vmatprep.subr.bf16.mxu0 0
  %723 = vmatpush1.bf16.msra.mxu0 0
  %724 = vmatprep.subr.bf16.mxu0 0
  %725 = vmatpush1.bf16.msra.mxu0 %v661
  %726 = vmatprep.subr.bf16.mxu0 0
  %727 = vmatpush1.bf16.msra.mxu0 %v660
  %728 = vmatprep.subr.bf16.mxu0 0
  %729 = vmatpush2.bf16.msra.mxu0 0
  %730 = vmatprep.subr.bf16.mxu0 0
  %731 = vmatpush2.bf16.msra.mxu0 0
  %732 = vmatprep.subr.bf16.mxu0 0
  %733 = vmatpush2.bf16.msra.mxu0 0
  %734 = vmatprep.subr.bf16.mxu0 0
  %735 = vmatpush2.bf16.msra.mxu0 0
  %736 = vmatprep.subr.bf16.mxu0 0
  %737 = vmatpush2.bf16.msra.mxu0 0
  %738 = vmatprep.subr.bf16.mxu0 0
  %739 = vmatpush2.bf16.msra.mxu0 0
  %740 = vmatprep.subr.bf16.mxu0 0
  %741 = vmatpush2.bf16.msra.mxu0 0
  %742 = vmatprep.subr.bf16.mxu0 0
  %743 = vmatpush2.bf16.msra.mxu0 0
  %744 = vmatprep.mubr.bf16.mxu0 0
  %745 = vmatmul.mubr.bf16.gmra.mxu0 %v665
  %v746 = vpop.f32.mrf.mxu0
  %v747 = vadd.f32 %v650, %v746
  %v748 = vpop.f32.mrf.mxu0
  %v749 = vpop.f32.mrf.mxu0
  %v750 = vadd.f32 %v650, %v749
  %v751 = vpop.f32.mrf.mxu0
  %752 = vmatprep.mubr.bf16.mxu0 0
  %753 = vmatmul.mubr.bf16.gmra.mxu0 %v668
  %v754 = vpop.f32.mrf.mxu0
  %v755 = vadd.f32 %v650, %v754
  %v756 = vpop.f32.mrf.mxu0
  %v757 = vpop.f32.mrf.mxu0
  %v758 = vadd.f32 %v650, %v757
  %v759 = vpop.f32.mrf.mxu0
  %760 = vmatprep.mubr.bf16.mxu0 0
  %761 = vmatmul.mubr.bf16.gmra.mxu0 %v671
  %v762 = vpop.f32.mrf.mxu0
  %v763 = vadd.f32 %v650, %v762
  %v764 = vpop.f32.mrf.mxu0
  %v765 = vpop.f32.mrf.mxu0
  %v766 = vadd.f32 %v650, %v765
  %v767 = vpop.f32.mrf.mxu0
  %768 = vmatprep.mubr.bf16.mxu0 0
  %769 = vmatmul.mubr.bf16.gmra.mxu0 %v674
  %v770 = vpop.f32.mrf.mxu0
  %v771 = vadd.f32 %v650, %v770
  %v772 = vpop.f32.mrf.mxu0
  %v773 = vpop.f32.mrf.mxu0
  %v774 = vadd.f32 %v650, %v773
  %v775 = vpop.f32.mrf.mxu0
  %776 = vmatprep.mubr.bf16.mxu0 0
  %777 = vmatmul.mubr.bf16.gmra.mxu0 %v677
  %v778 = vpop.f32.mrf.mxu0
  %v779 = vadd.f32 %v650, %v778
  %v780 = vpop.f32.mrf.mxu0
  %v781 = vpop.f32.mrf.mxu0
  %v782 = vadd.f32 %v650, %v781
  %v783 = vpop.f32.mrf.mxu0
  %784 = vmatprep.mubr.bf16.mxu0 0
  %785 = vmatmul.mubr.bf16.gmra.mxu0 %v680
  %v786 = vpop.f32.mrf.mxu0
  %v787 = vadd.f32 %v650, %v786
  %v788 = vpop.f32.mrf.mxu0
  %v789 = vpop.f32.mrf.mxu0
  %v790 = vadd.f32 %v650, %v789
  %v791 = vpop.f32.mrf.mxu0
  %792 = vmatprep.mubr.bf16.mxu0 0
  %793 = vmatmul.mubr.bf16.gmra.mxu0 %v683
  %v794 = vpop.f32.mrf.mxu0
  %v795 = vadd.f32 %v650, %v794
  %v796 = vpop.f32.mrf.mxu0
  %v797 = vpop.f32.mrf.mxu0
  %v798 = vadd.f32 %v650, %v797
  %v799 = vpop.f32.mrf.mxu0
  %800 = vmatprep.mubr.bf16.mxu0 0
  %801 = vmatmul.mubr.bf16.gmra.mxu0 %v686
  %v802 = vpop.f32.mrf.mxu0
  %v803 = vadd.f32 %v650, %v802
  %v804 = vpop.f32.mrf.mxu0
  %v805 = vpop.f32.mrf.mxu0
  %v806 = vadd.f32 %v650, %v805
  %v807 = vpop.f32.mrf.mxu0
  %808 = vmatprep.mubr.bf16.mxu0 0
  %809 = vmatmul.mubr.bf16.gmra.mxu0 %v689
  %v810 = vpop.f32.mrf.mxu0
  %v811 = vadd.f32 %v650, %v810
  %v812 = vpop.f32.mrf.mxu0
  %v813 = vpop.f32.mrf.mxu0
  %v814 = vadd.f32 %v650, %v813
  %v815 = vpop.f32.mrf.mxu0
  %816 = vmatprep.mubr.bf16.mxu0 0
  %817 = vmatmul.mubr.bf16.gmra.mxu0 %v692
  %v818 = vpop.f32.mrf.mxu0
  %v819 = vadd.f32 %v650, %v818
  %v820 = vpop.f32.mrf.mxu0
  %v821 = vpop.f32.mrf.mxu0
  %v822 = vadd.f32 %v650, %v821
  %v823 = vpop.f32.mrf.mxu0
  %824 = vmatprep.mubr.bf16.mxu0 0
  %825 = vmatmul.mubr.bf16.gmra.mxu0 %v695
  %v826 = vpop.f32.mrf.mxu0
  %v827 = vadd.f32 %v650, %v826
  %v828 = vpop.f32.mrf.mxu0
  %v829 = vpop.f32.mrf.mxu0
  %v830 = vadd.f32 %v650, %v829
  %v831 = vpop.f32.mrf.mxu0
  %832 = vmatprep.mubr.bf16.mxu0 0
  %833 = vmatmul.mubr.bf16.gmra.mxu0 %v698
  %v834 = vpop.f32.mrf.mxu0
  %v835 = vadd.f32 %v650, %v834
  %v836 = vpop.f32.mrf.mxu0
  %v837 = vpop.f32.mrf.mxu0
  %v838 = vadd.f32 %v650, %v837
  %v839 = vpop.f32.mrf.mxu0
  %840 = vmatprep.mubr.bf16.mxu0 0
  %841 = vmatmul.mubr.bf16.gmra.mxu0 %v701
  %v842 = vpop.f32.mrf.mxu0
  %v843 = vadd.f32 %v650, %v842
  %v844 = vpop.f32.mrf.mxu0
  %v845 = vpop.f32.mrf.mxu0
  %v846 = vadd.f32 %v650, %v845
  %v847 = vpop.f32.mrf.mxu0
  %848 = vmatprep.mubr.bf16.mxu0 0
  %849 = vmatmul.mubr.bf16.gmra.mxu0 %v704
  %v850 = vpop.f32.mrf.mxu0
  %v851 = vadd.f32 %v650, %v850
  %v852 = vpop.f32.mrf.mxu0
  %v853 = vpop.f32.mrf.mxu0
  %v854 = vadd.f32 %v650, %v853
  %v855 = vpop.f32.mrf.mxu0
  %856 = vmatprep.mubr.bf16.mxu0 0
  %857 = vmatmul.mubr.bf16.gmra.mxu0 %v707
  %v858 = vpop.f32.mrf.mxu0
  %v859 = vadd.f32 %v650, %v858
  %v860 = vpop.f32.mrf.mxu0
  %v861 = vpop.f32.mrf.mxu0
  %v862 = vadd.f32 %v650, %v861
  %v863 = vpop.f32.mrf.mxu0
  %864 = vmatprep.mubr.bf16.mxu0 0
  %865 = vmatmul.mubr.bf16.gmra.mxu0 %v710
  %v866 = vpop.f32.mrf.mxu0
  %v867 = vadd.f32 %v650, %v866
  %v868 = vpop.f32.mrf.mxu0
  %v869 = vpop.f32.mrf.mxu0
  %v870 = vadd.f32 %v650, %v869
  %v871 = vpop.f32.mrf.mxu0
  %872 = vdwg.mxu0
  %v873 = vmax.f32 %v747, 0.0
  %v874 = vmax.f32 %v750, 0.0
  %v875 = vmax.f32 %v755, 0.0
  %v876 = vmax.f32 %v758, 0.0
  %v877 = vmax.f32 %v763, 0.0
  %v878 = vmax.f32 %v766, 0.0
  %v879 = vmax.f32 %v771, 0.0
  %v880 = vmax.f32 %v774, 0.0
  %v881 = vmax.f32 %v779, 0.0
  %v882 = vmax.f32 %v782, 0.0
  %v883 = vmax.f32 %v787, 0.0
  %v884 = vmax.f32 %v790, 0.0
  %v885 = vmax.f32 %v795, 0.0
  %v886 = vmax.f32 %v798, 0.0
  %v887 = vmax.f32 %v803, 0.0
  %v888 = vmax.f32 %v806, 0.0
  %v889 = vmax.f32 %v811, 0.0
  %v890 = vmax.f32 %v814, 0.0
  %v891 = vmax.f32 %v819, 0.0
  %v892 = vmax.f32 %v822, 0.0
  %v893 = vmax.f32 %v827, 0.0
  %v894 = vmax.f32 %v830, 0.0
  %v895 = vmax.f32 %v835, 0.0
  %v896 = vmax.f32 %v838, 0.0
  %v897 = vmax.f32 %v843, 0.0
  %v898 = vmax.f32 %v846, 0.0
  %v899 = vmax.f32 %v851, 0.0
  %v900 = vmax.f32 %v854, 0.0
  %v901 = vmax.f32 %v859, 0.0
  %v902 = vmax.f32 %v862, 0.0
  %v903 = vmax.f32 %v867, 0.0
  %v904 = vmax.f32 %v870, 0.0
  %v905 = vld [vmem:[%s7] sm:$0xf]
  %v906 = vld [vmem:[%s7 + $0x4] sm:$0xf]
  %v907 = vld [vmem:[%s7 + $0x8] sm:$0xf]
  %v908 = vld [vmem:[%s7 + $0xc] sm:$0xf]
  %v909 = vld [vmem:[%s8] sm:$0x1]
  %v910 = vpack.c.bf16 %v874, %v873
  %v911 = vpack.c.bf16 %v876, %v875
  %v912 = vpack.c.bf16 %v878, %v877
  %v913 = vpack.c.bf16 %v880, %v879
  %v914 = vpack.c.bf16 %v882, %v881
  %v915 = vpack.c.bf16 %v884, %v883
  %v916 = vpack.c.bf16 %v886, %v885
  %v917 = vpack.c.bf16 %v888, %v887
  %v918 = vpack.c.bf16 %v890, %v889
  %v919 = vpack.c.bf16 %v892, %v891
  %v920 = vpack.c.bf16 %v894, %v893
  %v921 = vpack.c.bf16 %v896, %v895
  %v922 = vpack.c.bf16 %v898, %v897
  %v923 = vpack.c.bf16 %v900, %v899
  %v924 = vpack.c.bf16 %v902, %v901
  %v925 = vpack.c.bf16 %v904, %v903
  %v927 = vlaneseq
  %v928 = vshrl.u32 %v927, 7
  %v929 = vsub.s32 0, %v928
  %v930 = vrot.slane %v909, %v929
  %v936 = vunpack.c.l.b16 %v905
  %v937 = vunpack.c.l.b16 %v906
  %v938 = vunpack.c.l.b16 %v907
  %v939 = vunpack.c.l.b16 %v908
  %v940 = vpack.c.b16 %v937, %v936
  %v941 = vpack.c.b16 %v939, %v938
  %v945 = vsel %vm383, %v910, 0
  %v948 = vsel %vm383, %v911, 0
  %v951 = vsel %vm383, %v912, 0
  %v954 = vsel %vm383, %v913, 0
  %v957 = vsel %vm383, %v914, 0
  %v960 = vsel %vm383, %v915, 0
  %v963 = vsel %vm383, %v916, 0
  %v966 = vsel %vm383, %v917, 0
  %v969 = vsel %vm383, %v918, 0
  %v972 = vsel %vm383, %v919, 0
  %v975 = vsel %vm383, %v920, 0
  %v978 = vsel %vm383, %v921, 0
  %v981 = vsel %vm383, %v922, 0
  %v984 = vsel %vm383, %v923, 0
  %v987 = vsel %vm383, %v924, 0
  %v990 = vsel %vm383, %v925, 0
  %992 = vmatprep.subr.bf16.mxu0 0
  %993 = vmatpush1.bf16.msra.mxu0 0
  %994 = vmatprep.subr.bf16.mxu0 0
  %995 = vmatpush1.bf16.msra.mxu0 0
  %996 = vmatprep.subr.bf16.mxu0 0
  %997 = vmatpush1.bf16.msra.mxu0 0
  %998 = vmatprep.subr.bf16.mxu0 0
  %999 = vmatpush1.bf16.msra.mxu0 0
  %1000 = vmatprep.subr.bf16.mxu0 0
  %1001 = vmatpush1.bf16.msra.mxu0 0
  %1002 = vmatprep.subr.bf16.mxu0 0
  %1003 = vmatpush1.bf16.msra.mxu0 0
  %1004 = vmatprep.subr.bf16.mxu0 0
  %1005 = vmatpush1.bf16.msra.mxu0 %v941
  %1006 = vmatprep.subr.bf16.mxu0 0
  %1007 = vmatpush1.bf16.msra.mxu0 %v940
  %1008 = vmatprep.subr.bf16.mxu0 0
  %1009 = vmatpush2.bf16.msra.mxu0 0
  %1010 = vmatprep.subr.bf16.mxu0 0
  %1011 = vmatpush2.bf16.msra.mxu0 0
  %1012 = vmatprep.subr.bf16.mxu0 0
  %1013 = vmatpush2.bf16.msra.mxu0 0
  %1014 = vmatprep.subr.bf16.mxu0 0
  %1015 = vmatpush2.bf16.msra.mxu0 0
  %1016 = vmatprep.subr.bf16.mxu0 0
  %1017 = vmatpush2.bf16.msra.mxu0 0
  %1018 = vmatprep.subr.bf16.mxu0 0
  %1019 = vmatpush2.bf16.msra.mxu0 0
  %1020 = vmatprep.subr.bf16.mxu0 0
  %1021 = vmatpush2.bf16.msra.mxu0 0
  %1022 = vmatprep.subr.bf16.mxu0 0
  %1023 = vmatpush2.bf16.msra.mxu0 0
  %1024 = vmatprep.mubr.bf16.mxu0 0
  %1025 = vmatmul.mubr.bf16.gmra.mxu0 %v945
  %v1026 = vpop.f32.mrf.mxu0
  %v1027 = vadd.f32 %v930, %v1026
  %v1028 = vpop.f32.mrf.mxu0
  %v1029 = vpop.f32.mrf.mxu0
  %v1030 = vadd.f32 %v930, %v1029
  %v1031 = vpop.f32.mrf.mxu0
  %1032 = vmatprep.mubr.bf16.mxu0 0
  %1033 = vmatmul.mubr.bf16.gmra.mxu0 %v948
  %v1034 = vpop.f32.mrf.mxu0
  %v1035 = vadd.f32 %v930, %v1034
  %v1036 = vpop.f32.mrf.mxu0
  %v1037 = vpop.f32.mrf.mxu0
  %v1038 = vadd.f32 %v930, %v1037
  %v1039 = vpop.f32.mrf.mxu0
  %1040 = vmatprep.mubr.bf16.mxu0 0
  %1041 = vmatmul.mubr.bf16.gmra.mxu0 %v951
  %v1042 = vpop.f32.mrf.mxu0
  %v1043 = vadd.f32 %v930, %v1042
  %v1044 = vpop.f32.mrf.mxu0
  %v1045 = vpop.f32.mrf.mxu0
  %v1046 = vadd.f32 %v930, %v1045
  %v1047 = vpop.f32.mrf.mxu0
  %1048 = vmatprep.mubr.bf16.mxu0 0
  %1049 = vmatmul.mubr.bf16.gmra.mxu0 %v954
  %v1050 = vpop.f32.mrf.mxu0
  %v1051 = vadd.f32 %v930, %v1050
  %v1052 = vpop.f32.mrf.mxu0
  %v1053 = vpop.f32.mrf.mxu0
  %v1054 = vadd.f32 %v930, %v1053
  %v1055 = vpop.f32.mrf.mxu0
  %1056 = vmatprep.mubr.bf16.mxu0 0
  %1057 = vmatmul.mubr.bf16.gmra.mxu0 %v957
  %v1058 = vpop.f32.mrf.mxu0
  %v1059 = vadd.f32 %v930, %v1058
  %v1060 = vpop.f32.mrf.mxu0
  %v1061 = vpop.f32.mrf.mxu0
  %v1062 = vadd.f32 %v930, %v1061
  %v1063 = vpop.f32.mrf.mxu0
  %1064 = vmatprep.mubr.bf16.mxu0 0
  %1065 = vmatmul.mubr.bf16.gmra.mxu0 %v960
  %v1066 = vpop.f32.mrf.mxu0
  %v1067 = vadd.f32 %v930, %v1066
  %v1068 = vpop.f32.mrf.mxu0
  %v1069 = vpop.f32.mrf.mxu0
  %v1070 = vadd.f32 %v930, %v1069
  %v1071 = vpop.f32.mrf.mxu0
  %1072 = vmatprep.mubr.bf16.mxu0 0
  %1073 = vmatmul.mubr.bf16.gmra.mxu0 %v963
  %v1074 = vpop.f32.mrf.mxu0
  %v1075 = vadd.f32 %v930, %v1074
  %v1076 = vpop.f32.mrf.mxu0
  %v1077 = vpop.f32.mrf.mxu0
  %v1078 = vadd.f32 %v930, %v1077
  %v1079 = vpop.f32.mrf.mxu0
  %1080 = vmatprep.mubr.bf16.mxu0 0
  %1081 = vmatmul.mubr.bf16.gmra.mxu0 %v966
  %v1082 = vpop.f32.mrf.mxu0
  %v1083 = vadd.f32 %v930, %v1082
  %v1084 = vpop.f32.mrf.mxu0
  %v1085 = vpop.f32.mrf.mxu0
  %v1086 = vadd.f32 %v930, %v1085
  %v1087 = vpop.f32.mrf.mxu0
  %1088 = vmatprep.mubr.bf16.mxu0 0
  %1089 = vmatmul.mubr.bf16.gmra.mxu0 %v969
  %v1090 = vpop.f32.mrf.mxu0
  %v1091 = vadd.f32 %v930, %v1090
  %v1092 = vpop.f32.mrf.mxu0
  %v1093 = vpop.f32.mrf.mxu0
  %v1094 = vadd.f32 %v930, %v1093
  %v1095 = vpop.f32.mrf.mxu0
  %1096 = vmatprep.mubr.bf16.mxu0 0
  %1097 = vmatmul.mubr.bf16.gmra.mxu0 %v972
  %v1098 = vpop.f32.mrf.mxu0
  %v1099 = vadd.f32 %v930, %v1098
  %v1100 = vpop.f32.mrf.mxu0
  %v1101 = vpop.f32.mrf.mxu0
  %v1102 = vadd.f32 %v930, %v1101
  %v1103 = vpop.f32.mrf.mxu0
  %1104 = vmatprep.mubr.bf16.mxu0 0
  %1105 = vmatmul.mubr.bf16.gmra.mxu0 %v975
  %v1106 = vpop.f32.mrf.mxu0
  %v1107 = vadd.f32 %v930, %v1106
  %v1108 = vpop.f32.mrf.mxu0
  %v1109 = vpop.f32.mrf.mxu0
  %v1110 = vadd.f32 %v930, %v1109
  %v1111 = vpop.f32.mrf.mxu0
  %1112 = vmatprep.mubr.bf16.mxu0 0
  %1113 = vmatmul.mubr.bf16.gmra.mxu0 %v978
  %v1114 = vpop.f32.mrf.mxu0
  %v1115 = vadd.f32 %v930, %v1114
  %v1116 = vpop.f32.mrf.mxu0
  %v1117 = vpop.f32.mrf.mxu0
  %v1118 = vadd.f32 %v930, %v1117
  %v1119 = vpop.f32.mrf.mxu0
  %1120 = vmatprep.mubr.bf16.mxu0 0
  %1121 = vmatmul.mubr.bf16.gmra.mxu0 %v981
  %v1122 = vpop.f32.mrf.mxu0
  %v1123 = vadd.f32 %v930, %v1122
  %v1124 = vpop.f32.mrf.mxu0
  %v1125 = vpop.f32.mrf.mxu0
  %v1126 = vadd.f32 %v930, %v1125
  %v1127 = vpop.f32.mrf.mxu0
  %1128 = vmatprep.mubr.bf16.mxu0 0
  %1129 = vmatmul.mubr.bf16.gmra.mxu0 %v984
  %v1130 = vpop.f32.mrf.mxu0
  %v1131 = vadd.f32 %v930, %v1130
  %v1132 = vpop.f32.mrf.mxu0
  %v1133 = vpop.f32.mrf.mxu0
  %v1134 = vadd.f32 %v930, %v1133
  %v1135 = vpop.f32.mrf.mxu0
  %1136 = vmatprep.mubr.bf16.mxu0 0
  %1137 = vmatmul.mubr.bf16.gmra.mxu0 %v987
  %v1138 = vpop.f32.mrf.mxu0
  %v1139 = vadd.f32 %v930, %v1138
  %v1140 = vpop.f32.mrf.mxu0
  %v1141 = vpop.f32.mrf.mxu0
  %v1142 = vadd.f32 %v930, %v1141
  %v1143 = vpop.f32.mrf.mxu0
  %1144 = vmatprep.mubr.bf16.mxu0 0
  %1145 = vmatmul.mubr.bf16.gmra.mxu0 %v990
  %v1146 = vpop.f32.mrf.mxu0
  %v1147 = vadd.f32 %v930, %v1146
  %v1148 = vpop.f32.mrf.mxu0
  %v1149 = vpop.f32.mrf.mxu0
  %v1150 = vadd.f32 %v930, %v1149
  %v1151 = vpop.f32.mrf.mxu0
  %1152 = vdwg.mxu0
  %v1153 = vmax.f32 %v1027, 0.0
  %v1154 = vmax.f32 %v1030, 0.0
  %v1155 = vmax.f32 %v1035, 0.0
  %v1156 = vmax.f32 %v1038, 0.0
  %v1157 = vmax.f32 %v1043, 0.0
  %v1158 = vmax.f32 %v1046, 0.0
  %v1159 = vmax.f32 %v1051, 0.0
  %v1160 = vmax.f32 %v1054, 0.0
  %v1161 = vmax.f32 %v1059, 0.0
  %v1162 = vmax.f32 %v1062, 0.0
  %v1163 = vmax.f32 %v1067, 0.0
  %v1164 = vmax.f32 %v1070, 0.0
  %v1165 = vmax.f32 %v1075, 0.0
  %v1166 = vmax.f32 %v1078, 0.0
  %v1167 = vmax.f32 %v1083, 0.0
  %v1168 = vmax.f32 %v1086, 0.0
  %v1169 = vmax.f32 %v1091, 0.0
  %v1170 = vmax.f32 %v1094, 0.0
  %v1171 = vmax.f32 %v1099, 0.0
  %v1172 = vmax.f32 %v1102, 0.0
  %v1173 = vmax.f32 %v1107, 0.0
  %v1174 = vmax.f32 %v1110, 0.0
  %v1175 = vmax.f32 %v1115, 0.0
  %v1176 = vmax.f32 %v1118, 0.0
  %v1177 = vmax.f32 %v1123, 0.0
  %v1178 = vmax.f32 %v1126, 0.0
  %v1179 = vmax.f32 %v1131, 0.0
  %v1180 = vmax.f32 %v1134, 0.0
  %v1181 = vmax.f32 %v1139, 0.0
  %v1182 = vmax.f32 %v1142, 0.0
  %v1183 = vmax.f32 %v1147, 0.0
  %v1184 = vmax.f32 %v1150, 0.0
  %v1185 = vld [vmem:[%s9] sm:$0xf]
  %v1186 = vld [vmem:[%s9 + $0x4] sm:$0xf]
  %v1187 = vld [vmem:[%s9 + $0x8] sm:$0xf]
  %v1188 = vld [vmem:[%s9 + $0xc] sm:$0xf]
  %v1189 = vld [vmem:[%s10] sm:$0x1]
  %v1190 = vpack.c.bf16 %v1154, %v1153
  %v1191 = vpack.c.bf16 %v1156, %v1155
  %v1192 = vpack.c.bf16 %v1158, %v1157
  %v1193 = vpack.c.bf16 %v1160, %v1159
  %v1194 = vpack.c.bf16 %v1162, %v1161
  %v1195 = vpack.c.bf16 %v1164, %v1163
  %v1196 = vpack.c.bf16 %v1166, %v1165
  %v1197 = vpack.c.bf16 %v1168, %v1167
  %v1198 = vpack.c.bf16 %v1170, %v1169
  %v1199 = vpack.c.bf16 %v1172, %v1171
  %v1200 = vpack.c.bf16 %v1174, %v1173
  %v1201 = vpack.c.bf16 %v1176, %v1175
  %v1202 = vpack.c.bf16 %v1178, %v1177
  %v1203 = vpack.c.bf16 %v1180, %v1179
  %v1204 = vpack.c.bf16 %v1182, %v1181
  %v1205 = vpack.c.bf16 %v1184, %v1183
  %v1207 = vlaneseq
  %v1208 = vshrl.u32 %v1207, 7
  %v1209 = vsub.s32 0, %v1208
  %v1210 = vrot.slane %v1189, %v1209
  %v1216 = vunpack.c.l.b16 %v1185
  %v1217 = vunpack.c.l.b16 %v1186
  %v1218 = vunpack.c.l.b16 %v1187
  %v1219 = vunpack.c.l.b16 %v1188
  %v1220 = vpack.c.b16 %v1217, %v1216
  %v1221 = vpack.c.b16 %v1219, %v1218
  %v1225 = vsel %vm383, %v1190, 0
  %v1228 = vsel %vm383, %v1191, 0
  %v1231 = vsel %vm383, %v1192, 0
  %v1234 = vsel %vm383, %v1193, 0
  %v1237 = vsel %vm383, %v1194, 0
  %v1240 = vsel %vm383, %v1195, 0
  %v1243 = vsel %vm383, %v1196, 0
  %v1246 = vsel %vm383, %v1197, 0
  %v1249 = vsel %vm383, %v1198, 0
  %v1252 = vsel %vm383, %v1199, 0
  %v1255 = vsel %vm383, %v1200, 0
  %v1258 = vsel %vm383, %v1201, 0
  %v1261 = vsel %vm383, %v1202, 0
  %v1264 = vsel %vm383, %v1203, 0
  %v1267 = vsel %vm383, %v1204, 0
  %v1270 = vsel %vm383, %v1205, 0
  %1272 = vmatprep.subr.bf16.mxu0 0
  %1273 = vmatpush1.bf16.msra.mxu0 0
  %1274 = vmatprep.subr.bf16.mxu0 0
  %1275 = vmatpush1.bf16.msra.mxu0 0
  %1276 = vmatprep.subr.bf16.mxu0 0
  %1277 = vmatpush1.bf16.msra.mxu0 0
  %1278 = vmatprep.subr.bf16.mxu0 0
  %1279 = vmatpush1.bf16.msra.mxu0 0
  %1280 = vmatprep.subr.bf16.mxu0 0
  %1281 = vmatpush1.bf16.msra.mxu0 0
  %1282 = vmatprep.subr.bf16.mxu0 0
  %1283 = vmatpush1.bf16.msra.mxu0 0
  %1284 = vmatprep.subr.bf16.mxu0 0
  %1285 = vmatpush1.bf16.msra.mxu0 %v1221
  %1286 = vmatprep.subr.bf16.mxu0 0
  %1287 = vmatpush1.bf16.msra.mxu0 %v1220
  %1288 = vmatprep.subr.bf16.mxu0 0
  %1289 = vmatpush2.bf16.msra.mxu0 0
  %1290 = vmatprep.subr.bf16.mxu0 0
  %1291 = vmatpush2.bf16.msra.mxu0 0
  %1292 = vmatprep.subr.bf16.mxu0 0
  %1293 = vmatpush2.bf16.msra.mxu0 0
  %1294 = vmatprep.subr.bf16.mxu0 0
  %1295 = vmatpush2.bf16.msra.mxu0 0
  %1296 = vmatprep.subr.bf16.mxu0 0
  %1297 = vmatpush2.bf16.msra.mxu0 0
  %1298 = vmatprep.subr.bf16.mxu0 0
  %1299 = vmatpush2.bf16.msra.mxu0 0
  %1300 = vmatprep.subr.bf16.mxu0 0
  %1301 = vmatpush2.bf16.msra.mxu0 0
  %1302 = vmatprep.subr.bf16.mxu0 0
  %1303 = vmatpush2.bf16.msra.mxu0 0
  %1304 = vmatprep.mubr.bf16.mxu0 0
  %1305 = vmatmul.mubr.bf16.gmra.mxu0 %v1225
  %v1306 = vpop.f32.mrf.mxu0
  %v1307 = vadd.f32 %v1210, %v1306
  %v1308 = vpop.f32.mrf.mxu0
  %v1309 = vpop.f32.mrf.mxu0
  %v1310 = vadd.f32 %v1210, %v1309
  %v1311 = vpop.f32.mrf.mxu0
  %1312 = vmatprep.mubr.bf16.mxu0 0
  %1313 = vmatmul.mubr.bf16.gmra.mxu0 %v1228
  %v1314 = vpop.f32.mrf.mxu0
  %v1315 = vadd.f32 %v1210, %v1314
  %v1316 = vpop.f32.mrf.mxu0
  %v1317 = vpop.f32.mrf.mxu0
  %v1318 = vadd.f32 %v1210, %v1317
  %v1319 = vpop.f32.mrf.mxu0
  %1320 = vmatprep.mubr.bf16.mxu0 0
  %1321 = vmatmul.mubr.bf16.gmra.mxu0 %v1231
  %v1322 = vpop.f32.mrf.mxu0
  %v1323 = vadd.f32 %v1210, %v1322
  %v1324 = vpop.f32.mrf.mxu0
  %v1325 = vpop.f32.mrf.mxu0
  %v1326 = vadd.f32 %v1210, %v1325
  %v1327 = vpop.f32.mrf.mxu0
  %1328 = vmatprep.mubr.bf16.mxu0 0
  %1329 = vmatmul.mubr.bf16.gmra.mxu0 %v1234
  %v1330 = vpop.f32.mrf.mxu0
  %v1331 = vadd.f32 %v1210, %v1330
  %v1332 = vpop.f32.mrf.mxu0
  %v1333 = vpop.f32.mrf.mxu0
  %v1334 = vadd.f32 %v1210, %v1333
  %v1335 = vpop.f32.mrf.mxu0
  %1336 = vmatprep.mubr.bf16.mxu0 0
  %1337 = vmatmul.mubr.bf16.gmra.mxu0 %v1237
  %v1338 = vpop.f32.mrf.mxu0
  %v1339 = vadd.f32 %v1210, %v1338
  %v1340 = vpop.f32.mrf.mxu0
  %v1341 = vpop.f32.mrf.mxu0
  %v1342 = vadd.f32 %v1210, %v1341
  %v1343 = vpop.f32.mrf.mxu0
  %1344 = vmatprep.mubr.bf16.mxu0 0
  %1345 = vmatmul.mubr.bf16.gmra.mxu0 %v1240
  %v1346 = vpop.f32.mrf.mxu0
  %v1347 = vadd.f32 %v1210, %v1346
  %v1348 = vpop.f32.mrf.mxu0
  %v1349 = vpop.f32.mrf.mxu0
  %v1350 = vadd.f32 %v1210, %v1349
  %v1351 = vpop.f32.mrf.mxu0
  %1352 = vmatprep.mubr.bf16.mxu0 0
  %1353 = vmatmul.mubr.bf16.gmra.mxu0 %v1243
  %v1354 = vpop.f32.mrf.mxu0
  %v1355 = vadd.f32 %v1210, %v1354
  %v1356 = vpop.f32.mrf.mxu0
  %v1357 = vpop.f32.mrf.mxu0
  %v1358 = vadd.f32 %v1210, %v1357
  %v1359 = vpop.f32.mrf.mxu0
  %1360 = vmatprep.mubr.bf16.mxu0 0
  %1361 = vmatmul.mubr.bf16.gmra.mxu0 %v1246
  %v1362 = vpop.f32.mrf.mxu0
  %v1363 = vadd.f32 %v1210, %v1362
  %v1364 = vpop.f32.mrf.mxu0
  %v1365 = vpop.f32.mrf.mxu0
  %v1366 = vadd.f32 %v1210, %v1365
  %v1367 = vpop.f32.mrf.mxu0
  %1368 = vmatprep.mubr.bf16.mxu0 0
  %1369 = vmatmul.mubr.bf16.gmra.mxu0 %v1249
  %v1370 = vpop.f32.mrf.mxu0
  %v1371 = vadd.f32 %v1210, %v1370
  %v1372 = vpop.f32.mrf.mxu0
  %v1373 = vpop.f32.mrf.mxu0
  %v1374 = vadd.f32 %v1210, %v1373
  %v1375 = vpop.f32.mrf.mxu0
  %1376 = vmatprep.mubr.bf16.mxu0 0
  %1377 = vmatmul.mubr.bf16.gmra.mxu0 %v1252
  %v1378 = vpop.f32.mrf.mxu0
  %v1379 = vadd.f32 %v1210, %v1378
  %v1380 = vpop.f32.mrf.mxu0
  %v1381 = vpop.f32.mrf.mxu0
  %v1382 = vadd.f32 %v1210, %v1381
  %v1383 = vpop.f32.mrf.mxu0
  %1384 = vmatprep.mubr.bf16.mxu0 0
  %1385 = vmatmul.mubr.bf16.gmra.mxu0 %v1255
  %v1386 = vpop.f32.mrf.mxu0
  %v1387 = vadd.f32 %v1210, %v1386
  %v1388 = vpop.f32.mrf.mxu0
  %v1389 = vpop.f32.mrf.mxu0
  %v1390 = vadd.f32 %v1210, %v1389
  %v1391 = vpop.f32.mrf.mxu0
  %1392 = vmatprep.mubr.bf16.mxu0 0
  %1393 = vmatmul.mubr.bf16.gmra.mxu0 %v1258
  %v1394 = vpop.f32.mrf.mxu0
  %v1395 = vadd.f32 %v1210, %v1394
  %v1396 = vpop.f32.mrf.mxu0
  %v1397 = vpop.f32.mrf.mxu0
  %v1398 = vadd.f32 %v1210, %v1397
  %v1399 = vpop.f32.mrf.mxu0
  %1400 = vmatprep.mubr.bf16.mxu0 0
  %1401 = vmatmul.mubr.bf16.gmra.mxu0 %v1261
  %v1402 = vpop.f32.mrf.mxu0
  %v1403 = vadd.f32 %v1210, %v1402
  %v1404 = vpop.f32.mrf.mxu0
  %v1405 = vpop.f32.mrf.mxu0
  %v1406 = vadd.f32 %v1210, %v1405
  %v1407 = vpop.f32.mrf.mxu0
  %1408 = vmatprep.mubr.bf16.mxu0 0
  %1409 = vmatmul.mubr.bf16.gmra.mxu0 %v1264
  %v1410 = vpop.f32.mrf.mxu0
  %v1411 = vadd.f32 %v1210, %v1410
  %v1412 = vpop.f32.mrf.mxu0
  %v1413 = vpop.f32.mrf.mxu0
  %v1414 = vadd.f32 %v1210, %v1413
  %v1415 = vpop.f32.mrf.mxu0
  %1416 = vmatprep.mubr.bf16.mxu0 0
  %1417 = vmatmul.mubr.bf16.gmra.mxu0 %v1267
  %v1418 = vpop.f32.mrf.mxu0
  %v1419 = vadd.f32 %v1210, %v1418
  %v1420 = vpop.f32.mrf.mxu0
  %v1421 = vpop.f32.mrf.mxu0
  %v1422 = vadd.f32 %v1210, %v1421
  %v1423 = vpop.f32.mrf.mxu0
  %1424 = vmatprep.mubr.bf16.mxu0 0
  %1425 = vmatmul.mubr.bf16.gmra.mxu0 %v1270
  %v1426 = vpop.f32.mrf.mxu0
  %v1427 = vadd.f32 %v1210, %v1426
  %v1428 = vpop.f32.mrf.mxu0
  %v1429 = vpop.f32.mrf.mxu0
  %v1430 = vadd.f32 %v1210, %v1429
  %v1431 = vpop.f32.mrf.mxu0
  %1432 = vdwg.mxu0
  %vm1433 = vcmask 64512
  %1434 = vst.msk [vmem:[%s11] sm:$0xff] %vm1433, %v1307
  %1435 = vst.msk [vmem:[%s11 + $0x8] sm:$0xff] %vm1433, %v1310
  %1436 = vst.msk [vmem:[%s11 + $0x10] sm:$0xff] %vm1433, %v1315
  %1437 = vst.msk [vmem:[%s11 + $0x18] sm:$0xff] %vm1433, %v1318
  %1438 = vst.msk [vmem:[%s11 + $0x20] sm:$0xff] %vm1433, %v1323
  %1439 = vst.msk [vmem:[%s11 + $0x28] sm:$0xff] %vm1433, %v1326
  %1440 = vst.msk [vmem:[%s11 + $0x30] sm:$0xff] %vm1433, %v1331
  %1441 = vst.msk [vmem:[%s11 + $0x38] sm:$0xff] %vm1433, %v1334
  %1442 = vst.msk [vmem:[%s11 + $0x40] sm:$0xff] %vm1433, %v1339
  %1443 = vst.msk [vmem:[%s11 + $0x48] sm:$0xff] %vm1433, %v1342
  %1444 = vst.msk [vmem:[%s11 + $0x50] sm:$0xff] %vm1433, %v1347
  %1445 = vst.msk [vmem:[%s11 + $0x58] sm:$0xff] %vm1433, %v1350
  %1446 = vst.msk [vmem:[%s11 + $0x60] sm:$0xff] %vm1433, %v1355
  %1447 = vst.msk [vmem:[%s11 + $0x68] sm:$0xff] %vm1433, %v1358
  %1448 = vst.msk [vmem:[%s11 + $0x70] sm:$0xff] %vm1433, %v1363
  %1449 = vst.msk [vmem:[%s11 + $0x78] sm:$0xff] %vm1433, %v1366
  %1450 = vst.msk [vmem:[%s11 + $0x80] sm:$0xff] %vm1433, %v1371
  %1451 = vst.msk [vmem:[%s11 + $0x88] sm:$0xff] %vm1433, %v1374
  %1452 = vst.msk [vmem:[%s11 + $0x90] sm:$0xff] %vm1433, %v1379
  %1453 = vst.msk [vmem:[%s11 + $0x98] sm:$0xff] %vm1433, %v1382
  %1454 = vst.msk [vmem:[%s11 + $0xa0] sm:$0xff] %vm1433, %v1387
  %1455 = vst.msk [vmem:[%s11 + $0xa8] sm:$0xff] %vm1433, %v1390
  %1456 = vst.msk [vmem:[%s11 + $0xb0] sm:$0xff] %vm1433, %v1395
  %1457 = vst.msk [vmem:[%s11 + $0xb8] sm:$0xff] %vm1433, %v1398
  %1458 = vst.msk [vmem:[%s11 + $0xc0] sm:$0xff] %vm1433, %v1403
  %1459 = vst.msk [vmem:[%s11 + $0xc8] sm:$0xff] %vm1433, %v1406
  %1460 = vst.msk [vmem:[%s11 + $0xd0] sm:$0xff] %vm1433, %v1411
  %1461 = vst.msk [vmem:[%s11 + $0xd8] sm:$0xff] %vm1433, %v1414
  %1462 = vst.msk [vmem:[%s11 + $0xe0] sm:$0xff] %vm1433, %v1419
  %1463 = vst.msk [vmem:[%s11 + $0xe8] sm:$0xff] %vm1433, %v1422
  %1464 = vst.msk [vmem:[%s11 + $0xf0] sm:$0xff] %vm1433, %v1427
  %1465 = vst.msk [vmem:[%s11 + $0xf8] sm:$0xff] %vm1433, %v1430
  // Predicated region
  $region46: #{mlp_forward.1} parent=0 // pred_check
    _
  $region47: #{mlp_forward.1} parent=0 // pred_check_branch
    %1467 = sbr.rel (0) target = $region49
  $region48: #{mlp_forward.1} parent=0 // pred_region
    _
  $region49: #{mlp_forward.1} parent=0 // pred_fallthru
    _
  // Predicated region
  $region50: #{mlp_forward.1} parent=0 // pred_check
    _
  $region51: #{mlp_forward.1} parent=0 // pred_check_branch
    %1469 = sbr.rel (0) target = $region53
  $region52: #{mlp_forward.1} parent=0 // pred_region
    _
  $region53: #{mlp_forward.1} parent=0 // pred_fallthru
    _

</llo_original>
